<compile_context>
chip_gen: v7x
topology: tpu7x:2x2x1
jax: 0.10.0
libtpu: 0.0.40
codegen_flags: <defaults>
</compile_context>

<pallas_src>
import math
import functools

import jax
import jax.numpy as jnp
from jax import lax
from jax.experimental import pallas as pl
from jax.experimental.pallas import tpu as pltpu


_VMEM_LIMIT = 32 * 1024 * 1024    # scoped-VMEM limit requested from Mosaic (safe on v5e/v6e/v7x)
_VMEM_BUDGET = 20 * 1024 * 1024   # target per-kernel double-buffered working set


# ---------------------------------------------------------------------------
# Tile selection helpers (always return a legal block size: either a power-of-2
# multiple of 8 / 128 that divides the dim, or the full dim itself).
# ---------------------------------------------------------------------------
def _pick_sublane_tile(dim, target):
    t = target
    while t >= 8:
        if dim % t == 0:
            return t
        t //= 2
    return dim


def _pick_lane_tile(dim, target):
    t = target
    while t >= 128:
        if dim % t == 0:
            return t
        t //= 2
    return dim


# ---------------------------------------------------------------------------
# Linear (matmul + bias)
# ---------------------------------------------------------------------------
def _linear_resident_kernel(x_ref, w_ref, b_ref, o_ref, *, compute_dtype):
    # Whole weight panel resident in VMEM: single bf16 MXU matmul, f32 accumulate.
    acc = jnp.dot(x_ref[...].astype(compute_dtype),
                  w_ref[...].astype(compute_dtype),
                  preferred_element_type=jnp.float32)
    o_ref[...] = (acc + b_ref[...].astype(jnp.float32)).astype(o_ref.dtype)


def _linear_ktiled_kernel(x_ref, w_ref, b_ref, o_ref, acc_ref, *, compute_dtype):
    @pl.when(pl.program_id(2) == 0)
    def _init():
        acc_ref[...] = jnp.zeros_like(acc_ref)

    acc_ref[...] += jnp.dot(x_ref[...].astype(compute_dtype),
                            w_ref[...].astype(compute_dtype),
                            preferred_element_type=jnp.float32)

    @pl.when(pl.program_id(2) == pl.num_programs(2) - 1)
    def _finalize():
        o_ref[...] = (acc_ref[...] + b_ref[...].astype(jnp.float32)).astype(o_ref.dtype)


def linear(x, w, b, *, out_dtype=None, compute_dtype=jnp.bfloat16,
           tm_target=512, tn_target=512, tk_target=1024):
    """x: (M, K), w: (K, N), b: (N,) -> (M, N)."""
    M, K = x.shape
    N = w.shape[1]
    out_dtype = out_dtype if out_dtype is not None else x.dtype
    xb = jnp.dtype(x.dtype).itemsize
    wb = jnp.dtype(w.dtype).itemsize
    ob = jnp.dtype(out_dtype).itemsize
    b2 = b.reshape(1, N)

    # ---- Path A: whole weight resident in VMEM (one pass of x, w and out) ----
    def _resident_bytes(tm):
        return (2 * tm * K * xb      # x tile, double-buffered
                + 2 * K * N * wb     # weight (counted double-buffered, conservative)
                + 2 * N * 4          # bias
                + 2 * tm * N * ob)   # output tile, double-buffered

    tm = _pick_sublane_tile(M, tm_target)
    while tm > 8 and _resident_bytes(tm) > _VMEM_BUDGET:
        nt = _pick_sublane_tile(M, tm // 2)
        if nt == tm:
            break
        tm = nt
    if _resident_bytes(tm) <= _VMEM_BUDGET:
        # Keep the parallel grid extent >= 2 when possible (v7x megacore).
        if M // tm < 2:
            nt = _pick_sublane_tile(M, tm // 2)
            if nt >= 16 and M // nt >= 2:
                tm = nt
        kern = functools.partial(_linear_resident_kernel, compute_dtype=compute_dtype)
        return pl.pallas_call(
            kern,
            out_shape=jax.ShapeDtypeStruct((M, N), out_dtype),
            grid_spec=pltpu.PrefetchScalarGridSpec(
                num_scalar_prefetch=0,
                grid=(M // tm,),
                in_specs=[
                    pl.BlockSpec((tm, K), lambda i: (i, 0)),
                    pl.BlockSpec((K, N), lambda i: (0, 0)),   # fetched once, stays resident
                    pl.BlockSpec((1, N), lambda i: (0, 0)),
                ],
                out_specs=pl.BlockSpec((tm, N), lambda i: (i, 0)),
            ),
            compiler_params=pltpu.CompilerParams(
                dimension_semantics=("parallel",),
                vmem_limit_bytes=_VMEM_LIMIT),
        )(x, w, b2)

    # ---- Path B: k-tiled reduction with f32 VMEM accumulator (large weights) ----
    tm = _pick_sublane_tile(M, tm_target)
    tn = _pick_lane_tile(N, tn_target)
    tk = _pick_lane_tile(K, tk_target)
    kern = functools.partial(_linear_ktiled_kernel, compute_dtype=compute_dtype)
    return pl.pallas_call(
        kern,
        out_shape=jax.ShapeDtypeStruct((M, N), out_dtype),
        grid_spec=pltpu.PrefetchScalarGridSpec(
            num_scalar_prefetch=0,
            grid=(M // tm, N // tn, K // tk),
            in_specs=[
                pl.BlockSpec((tm, tk), lambda i, j, k: (i, k)),
                pl.BlockSpec((tk, tn), lambda i, j, k: (k, j)),
                pl.BlockSpec((1, tn), lambda i, j, k: (0, j)),
            ],
            out_specs=pl.BlockSpec((tm, tn), lambda i, j, k: (i, j)),
            scratch_shapes=[pltpu.VMEM((tm, tn), jnp.float32)],
        ),
        compiler_params=pltpu.CompilerParams(
            dimension_semantics=("parallel", "parallel", "arbitrary"),
            vmem_limit_bytes=_VMEM_LIMIT),
    )(x, w, b2)


# ---------------------------------------------------------------------------
# Flash-style causal attention on the head-packed (B, T, C) layout.
# Grid = (B, n_lower_triangular_block_pairs); qi/ki come from scalar-prefetched
# SMEM lookup tables, so masked blocks incur neither DMA nor grid steps.
# The softmax scale is pre-folded into the q projection weights.
# ---------------------------------------------------------------------------
def _flash_attn_kernel(qi_tbl_ref, ki_tbl_ref, q_ref, k_ref, v_ref, o_ref,
                       m_ref, l_ref, acc_ref, *, n_head, d_head, tq, tk):
    pair = pl.program_id(1)
    qi = qi_tbl_ref[pair]
    ki = ki_tbl_ref[pair]

    @pl.when(ki == 0)
    def _init():
        # Large finite init (not -inf) so exp(m_prev - m_new) never hits inf-inf.
        m_ref[...] = jnp.full_like(m_ref, -1e30)
        l_ref[...] = jnp.zeros_like(l_ref)
        acc_ref[...] = jnp.zeros_like(acc_ref)

    q_all = q_ref[0]    # (tq, C), bf16, q columns already scaled by 1/sqrt(d)
    k_all = k_ref[0]    # (tk, C)
    v_all = v_ref[0]    # (tk, C)

    def _step(masked):
        if masked:
            row = qi * tq + lax.broadcasted_iota(jnp.int32, (tq, tk), 0)
            col = ki * tk + lax.broadcasted_iota(jnp.int32, (tq, tk), 1)
            keep = col <= row
        for h in range(n_head):
            sl = slice(h * d_head, (h + 1) * d_head)
            # (tq, d) x (tk, d) contracted on the last dims -> (tq, tk); bf16 MXU, f32 acc.
            s = lax.dot_general(q_all[:, sl], k_all[:, sl],
                                dimension_numbers=(((1,), (1,)), ((), ())),
                                preferred_element_type=jnp.float32)
            if masked:
                # Finite mask value: every diagonal-block row has col==row unmasked,
                # so m_next stays well above -1e30 and exp underflows cleanly to 0.
                s = jnp.where(keep, s, -1e30)
            m_prev = m_ref[h]                                           # (tq, 128)
            m_next = jnp.maximum(m_prev, jnp.max(s, axis=-1, keepdims=True))
            alpha = jnp.exp(m_prev - m_next)                            # (tq, 128)
            p_mat = jnp.exp(s - m_next[:, 0:1])                         # (tq, tk)
            l_ref[h] = alpha * l_ref[h] + jnp.sum(p_mat, axis=-1, keepdims=True)
            pv = jnp.dot(p_mat.astype(v_all.dtype), v_all[:, sl],
                         preferred_element_type=jnp.float32)            # (tq, d)
            acc_ref[h] = alpha[:, 0:1] * acc_ref[h] + pv
            m_ref[h] = m_next

    @pl.when(ki != qi)
    def _interior_block():        # fully visible: no mask work at all
        _step(masked=False)

    @pl.when(ki == qi)
    def _diag_block_and_finalize():
        _step(masked=True)
        # ki == qi is the last kv block of this causal row -> normalize and store
        # one lane-dense (tq, C) block.
        outs = []
        for h in range(n_head):
            inv_l = pl.reciprocal(l_ref[h][:, 0:1], approx=True)        # EUP slot
            outs.append(acc_ref[h] * inv_l)
        o_ref[0] = jnp.concatenate(outs, axis=-1).astype(o_ref.dtype)


def flash_attention(q, k, v, *, n_head, tq_target=512):
    """q/k/v: (B, T, C) head-major packed (head h occupies lanes [h*d, (h+1)*d))."""
    B, T, C = q.shape
    d = C // n_head
    in_b = jnp.dtype(q.dtype).itemsize

    def _bytes(t):
        return (2 * 3 * t * C * in_b        # q, k, v blocks (double-buffered)
                + 2 * t * C * in_b          # output block
                + 2 * n_head * t * 128 * 4  # m, l scratch (lane-broadcast)
                + n_head * t * d * 4)       # per-head f32 accumulator

    tq = _pick_sublane_tile(T, tq_target)
    while tq > 8 and _bytes(tq) > _VMEM_BUDGET:
        nt = _pick_sublane_tile(T, tq // 2)
        if nt == tq:
            break
        tq = nt
    tk = tq  # equal q/k tiles keep the block-level causal classification exact

    # Lower-triangular (qi, ki) block pairs only: masked blocks never get a grid
    # step or a K/V DMA.  Pairs are grouped by qi with ki ascending so the output
    # block stays resident until its finalize step.
    n_q = T // tq
    pairs = [(a, c) for a in range(n_q) for c in range(a + 1)]
    qi_tbl = jnp.asarray([a for a, _ in pairs], dtype=jnp.int32)
    ki_tbl = jnp.asarray([c for _, c in pairs], dtype=jnp.int32)

    kern = functools.partial(_flash_attn_kernel,
                             n_head=n_head, d_head=d, tq=tq, tk=tk)
    return pl.pallas_call(
        kern,
        out_shape=jax.ShapeDtypeStruct((B, T, C), q.dtype),
        grid_spec=pltpu.PrefetchScalarGridSpec(
            num_scalar_prefetch=2,
            grid=(B, len(pairs)),
            in_specs=[
                pl.BlockSpec((1, tq, C), lambda b, p, qt, kt: (b, qt[p], 0)),
                pl.BlockSpec((1, tk, C), lambda b, p, qt, kt: (b, kt[p], 0)),
                pl.BlockSpec((1, tk, C), lambda b, p, qt, kt: (b, kt[p], 0)),
            ],
            out_specs=pl.BlockSpec((1, tq, C), lambda b, p, qt, kt: (b, qt[p], 0)),
            scratch_shapes=[
                pltpu.VMEM((n_head, tq, 128), jnp.float32),   # running max (lane-broadcast)
                pltpu.VMEM((n_head, tq, 128), jnp.float32),   # running denominator
                pltpu.VMEM((n_head, tq, d), jnp.float32),     # per-head output accumulator
            ],
        ),
        compiler_params=pltpu.CompilerParams(
            dimension_semantics=("parallel", "arbitrary"),
            vmem_limit_bytes=_VMEM_LIMIT),
    )(qi_tbl, ki_tbl, q, k, v)


# ---------------------------------------------------------------------------
# One-time parameter preparation (host-side, outside the forward pass):
#   * permute qkv output columns from per-head [q_h|k_h|v_h] interleave to
#     [q (head-major) | k (head-major) | v (head-major)],
#   * fold the 1/sqrt(d_head) softmax scale into the q columns/bias,
#   * cast weights to bf16 for the MXU (biases stay f32).
# ---------------------------------------------------------------------------
def prepare_params(w_qkv, b_qkv, w_out, b_out, n_head, compute_dtype=jnp.bfloat16):
    C = w_qkv.shape[0]
    d = C // n_head
    scale = 1.0 / math.sqrt(d)
    scale_vec = jnp.array([scale, 1.0, 1.0], dtype=jnp.float32).reshape(1, 1, 3, 1)
    w = w_qkv.astype(jnp.float32).reshape(C, n_head, 3, d) * scale_vec
    w = w.transpose(0, 2, 1, 3).reshape(C, 3 * C)
    b = b_qkv.astype(jnp.float32).reshape(n_head, 3, d) * scale_vec[0]
    b = b.transpose(1, 0, 2).reshape(3 * C)
    return (w.astype(compute_dtype), b.astype(jnp.float32),
            w_out.astype(compute_dtype), b_out.astype(jnp.float32))


# ---------------------------------------------------------------------------
# Forward pass wrapper (no head transposes anywhere)
# ---------------------------------------------------------------------------
def mha_forward(x, params, n_head):
    w_qkv, b_qkv, w_out, b_out = params
    B, T, C = x.shape
    assert C % n_head == 0
    compute_dtype = w_qkv.dtype

    # QKV projection (weight-resident Pallas matmul, bf16 MXU / f32 accumulate).
    qkv = linear(x.reshape(B * T, C), w_qkv, b_qkv,
                 out_dtype=compute_dtype, compute_dtype=compute_dtype)   # (B*T, 3C)

    # Head-major packed q/k/v, each (B, T, C); no (B,H,T,d) transpose needed.
    # TODO(synk): this split is still one XLA copy pass; fusing it into the
    # attention BlockSpecs needs C to be a multiple of 128 for a legal last-dim block.
    q, k, v = jnp.split(qkv.reshape(B, T, 3 * C), 3, axis=-1)

    attn = flash_attention(q, k, v, n_head=n_head)                       # (B, T, C)

    # Output projection; attention output layout already matches the module's
    # permute(0,2,1,3).view(B,T,C) layout, so w_out is used unpermuted.
    out = linear(attn.reshape(B * T, C), w_out, b_out,
                 out_dtype=x.dtype, compute_dtype=compute_dtype)
    return out.reshape(B, T, C)


# ---------------------------------------------------------------------------
# Pure-JAX reference (mirrors the PyTorch forward exactly) for validation
# ---------------------------------------------------------------------------
def mha_reference(x, w_qkv, b_qkv, w_out, b_out, n_head):
    B, T, C = x.shape
    d = C // n_head
    qkv = x @ w_qkv + b_qkv                                    # (B, T, 3C)
    qkv = qkv.reshape(B, T, n_head, 3 * d)
    q, k, v = jnp.split(qkv, 3, axis=-1)
    q, k, v = [jnp.transpose(t, (0, 2, 1, 3)) for t in (q, k, v)]  # (B, H, T, d)
    s = jnp.einsum("bhqd,bhkd->bhqk", q, k) / math.sqrt(d)
    mask = jnp.tril(jnp.ones((T, T), dtype=bool))
    s = jnp.where(mask, s, -jnp.inf)
    w = jax.nn.softmax(s, axis=-1)
    o = jnp.einsum("bhqk,bhkd->bhqd", w, v)
    o = jnp.transpose(o, (0, 2, 1, 3)).reshape(B, T, C)
    return o @ w_out + b_out


# ---------------------------------------------------------------------------
if __name__ == "__main__":
    B, T, C, H = 2, 8, 32, 4

    key = jax.random.PRNGKey(0)
    k1, k2, k3, k4, k5 = jax.random.split(key, 5)

    x = jax.random.normal(k1, (B, T, C), dtype=jnp.float32)
    # Deterministic synthetic parameters (Linear stored as (in, out); bias (out,))
    bound = 1.0 / math.sqrt(C)
    w_qkv = jax.random.uniform(k2, (C, 3 * C), jnp.float32, -bound, bound)
    b_qkv = jax.random.uniform(k3, (3 * C,), jnp.float32, -bound, bound)
    w_out = jax.random.uniform(k4, (C, C), jnp.float32, -bound, bound)
    b_out = jax.random.uniform(k5, (C,), jnp.float32, -bound, bound)

    params = prepare_params(w_qkv, b_qkv, w_out, b_out, H)
    y = mha_forward(x, params, H)
    jax.block_until_ready(y)

    y_ref = mha_reference(x, w_qkv, b_qkv, w_out, b_out, H)
    assert y.shape == (B, T, C)
    # Tolerance accounts for bf16 MXU operands / bf16 intermediates and the
    # EUP approx-reciprocal softmax normalization (accumulation is f32 throughout).
    max_err = float(jnp.max(jnp.abs(y - y_ref)))
    assert jnp.allclose(y, y_ref, atol=5e-2, rtol=5e-2), f"mismatch vs reference (max abs err {max_err})"

    print("KERNEL_OK")
</pallas_src>

<mosaic_0001>
module attributes {stable_mosaic.version = 11 : i64} {
  func.func @_linear_resident_kernel(%arg0: i32, %arg1: memref<16x32xf32, #tpu.memory_space<vmem>>, %arg2: memref<32x96xbf16, #tpu.memory_space<vmem>>, %arg3: memref<1x96xf32, #tpu.memory_space<vmem>>, %arg4: memref<16x96xbf16, #tpu.memory_space<vmem>>) attributes {dimension_semantics = [#tpu.dimension_semantics<parallel>], iteration_bounds = array<i64: 1>, scalar_prefetch = 0 : i64, scratch_operands = 0 : i64, tpu.core_type = #tpu.core_type<tc>, window_params = [{transform_indices = @transform_0, window_bounds = array<i64: 16, 32>}, {pipeline_mode = #tpu.pipeline_mode<synchronous>, transform_indices = @transform_1, window_bounds = array<i64: 32, 96>}, {pipeline_mode = #tpu.pipeline_mode<synchronous>, transform_indices = @transform_2, window_bounds = array<i64: 1, 96>}, {transform_indices = @transform_3, window_bounds = array<i64: 16, 96>}]} {
    %c0 = arith.constant 0 : index
    %c0_0 = arith.constant 0 : index
    %0 = vector.load %arg1[%c0, %c0_0] : memref<16x32xf32, #tpu.memory_space<vmem>>, vector<16x32xf32>
    %1 = arith.truncf %0 : vector<16x32xf32> to vector<16x32xbf16>
    %c0_1 = arith.constant 0 : index
    %c0_2 = arith.constant 0 : index
    %2 = vector.load %arg2[%c0_1, %c0_2] : memref<32x96xbf16, #tpu.memory_space<vmem>>, vector<32x96xbf16>
    %cst = arith.constant dense<0.000000e+00> : vector<16x96xf32>
    %3 = tpu.matmul %1, %2, %cst {dimension_numbers = #tpu.dot_dimension_numbers<[1], [0], [0], [1], [0, 0, 1, 1], [], []>} : vector<16x32xbf16>, vector<32x96xbf16>, vector<16x96xf32> -> vector<16x96xf32>
    %c0_3 = arith.constant 0 : index
    %c0_4 = arith.constant 0 : index
    %4 = vector.load %arg3[%c0_3, %c0_4] : memref<1x96xf32, #tpu.memory_space<vmem>>, vector<1x96xf32>
    %5 = vector.broadcast %4 : vector<1x96xf32> to vector<16x96xf32>
    %6 = arith.addf %3, %5 : vector<16x96xf32>
    %7 = arith.truncf %6 : vector<16x96xf32> to vector<16x96xbf16>
    %c0_5 = arith.constant 0 : index
    %c0_6 = arith.constant 0 : index
    %8 = vector.load %arg4[%c0_5, %c0_6] : memref<16x96xbf16, #tpu.memory_space<vmem>>, vector<16x96xbf16>
    tpu.vector_store %arg4[%c0_5, %c0_6], %7 {strides = array<i32>} : memref<16x96xbf16, #tpu.memory_space<vmem>>, vector<16x96xbf16>,
    return
  }
  func.func @transform_0(%arg0: i32) -> (i32, i32) {
    %c0_i32 = arith.constant 0 : i32
    %c0_i32_0 = arith.constant 0 : i32
    return %arg0, %c0_i32 : i32, i32
  }
  func.func @transform_1(%arg0: i32) -> (i32, i32) {
    %c0_i32 = arith.constant 0 : i32
    %c0_i32_0 = arith.constant 0 : i32
    %c0_i32_1 = arith.constant 0 : i32
    return %c0_i32, %c0_i32_0 : i32, i32
  }
  func.func @transform_2(%arg0: i32) -> (i32, i32) {
    %c0_i32 = arith.constant 0 : i32
    %c0_i32_0 = arith.constant 0 : i32
    %c0_i32_1 = arith.constant 0 : i32
    return %c0_i32, %c0_i32_0 : i32, i32
  }
  func.func @transform_3(%arg0: i32) -> (i32, i32) {
    %c0_i32 = arith.constant 0 : i32
    %c0_i32_0 = arith.constant 0 : i32
    return %arg0, %c0_i32 : i32, i32
  }
}

</mosaic_0001>

<llo_original>
// kernel: tpu_custom_call.1
$region0: #{tpu_custom_call.1}
  #allocation0 [shape = 'u32[]', space=smem, size = 0x4, offset = 0x4, fixed_abs, tag = 'smem constant byte address 0x4 - core index']
  #allocation1 [shape = 'u32[144,128]{1,0:T(1,128)}', space=vmem, size = 0x12000, scoped, tag = 'internal scratch']
  %s0 = inlined_call_operand.hbm [shape: f32[16,32], index: 0, kind: input, shape index: {}]
  %s1 = inlined_call_operand.hbm [shape: bf16[32,96], index: 1, kind: input, shape index: {}]
  %s2 = inlined_call_operand.vmem [shape: f32[1,96], index: 2, kind: input, shape index: {}]
  %s3 = inlined_call_operand.hbm [shape: bf16[16,96], index: 3, kind: output, shape index: {}]
  %s4 = sld [smem:[#allocation0]]
  $region30: #{tpu_custom_call.1} parent=0
    _
  %s6 = ssub.s32 1, %s4
  %s7 = scalar_select 0, %s6, %s4
  $region1: #{tpu_custom_call.1} parent=0
    #allocation2 [shape = 'u8[8192]{0}', space=vmem, size = 0x2000, scoped, tag = 'input window, operand 0, single buffered']
    #allocation3 [shape = 's32[1]{0}', space=sflag, size = 0x4, scoped, tag = 'scoped memory for tpu_custom_call.1']
    #allocation4 [shape = 's32[1]{0}', space=sflag, size = 0x4, scoped, tag = 'scoped memory for tpu_custom_call.1']
    #allocation5 [shape = 'u8[8192]{0}', space=vmem, size = 0x2000, scoped, tag = 'input window, operand 1, single buffered']
    #allocation6 [shape = 's32[1]{0}', space=sflag, size = 0x4, scoped, tag = 'scoped memory for tpu_custom_call.1']
    #allocation7 [shape = 'u8[4096]{0}', space=vmem, size = 0x1000, scoped, tag = 'output window, operand 0, single buffered']
    %8 = vsyncpa [#allocation3], 0
    %9 = vsyncpa [#allocation6], 0
    %10 = vsyncpa [#allocation4], 0
    // Predicated region
    $region2: #{tpu_custom_call.1} parent=1 // pred_check
      _
    $region3: #{tpu_custom_call.1} parent=1 // pred_check_branch
      %12 = sbr.rel (0) target = $region5
    $region4: #{tpu_custom_call.1} parent=1 // pred_region
      %s14 = ssub.s32 256, 256
      %15 = vsyncadd [#allocation3], %s14
      %s16 = sshll.u32 [#allocation2], 4
      %s17 = int_to_ptr.vmem [resolvable:$true] %s16
      %22 = dma.hbm_to_vmem [thread:$0]  %s0, 256, %s17, [#allocation3], 128, 128, 8
    $region5: #{tpu_custom_call.1} parent=1 // pred_fallthru
      _
    // Predicated region
    $region6: #{tpu_custom_call.1} parent=1 // pred_check
      _
    $region7: #{tpu_custom_call.1} parent=1 // pred_check_branch
      %24 = sbr.rel (0) target = $region9
    $region8: #{tpu_custom_call.1} parent=1 // pred_region
      %s26 = ssub.s32 256, 256
      %27 = vsyncadd [#allocation6], %s26
      %s28 = sshll.u32 [#allocation5], 4
      %s29 = int_to_ptr.vmem [resolvable:$true] %s28
      %34 = dma.hbm_to_vmem [thread:$0]  %s1, 256, %s29, [#allocation6], 64, 64, 4
    $region9: #{tpu_custom_call.1} parent=1 // pred_fallthru
      _
    // Predicated region
    $region10: #{tpu_custom_call.1} parent=1 // pred_check
      _
    $region11: #{tpu_custom_call.1} parent=1 // pred_check_branch
      %36 = sbr.rel (0) target = $region13
    $region12: #{tpu_custom_call.1} parent=1 // pred_region
      _
    $region13: #{tpu_custom_call.1} parent=1 // pred_fallthru
      _
    // Predicated region
    $region14: #{tpu_custom_call.1} parent=1 // pred_check
      _
    $region15: #{tpu_custom_call.1} parent=1 // pred_check_branch
      %38 = sbr.rel (0) target = $region17
    $region16: #{tpu_custom_call.1} parent=1 // pred_region
      %39 = dma.done [#allocation3], 256
    $region17: #{tpu_custom_call.1} parent=1 // pred_fallthru
      _
    // Predicated region
    $region18: #{tpu_custom_call.1} parent=1 // pred_check
      _
    $region19: #{tpu_custom_call.1} parent=1 // pred_check_branch
      %41 = sbr.rel (0) target = $region21
    $region20: #{tpu_custom_call.1} parent=1 // pred_region
      %42 = dma.done [#allocation6], 256
    $region21: #{tpu_custom_call.1} parent=1 // pred_fallthru
      _
    %v44 = vld [vmem:[#allocation2] sm:$0xff]
    %v45 = vld [vmem:[#allocation2 + $0x8] sm:$0xff]
    %v46 = vpack.c.bf16 %v45, %v44
    %v47 = vld [vmem:[#allocation5] sm:$0xf]
    %v48 = vld [vmem:[#allocation5 + $0x4] sm:$0xf]
    %v49 = vld [vmem:[#allocation5 + $0x8] sm:$0xf]
    %v50 = vld [vmem:[#allocation5 + $0xc] sm:$0xf]
    %v51 = vld [vmem:[%s2] sm:$0x1]
    %v53 = vlaneseq
    %v54 = vshrl.u32 %v53, 7
    %v55 = vsub.s32 0, %v54
    %v56 = vrot.slane %v51, %v55
    %v62 = vunpack.c.l.b16 %v47
    %v63 = vunpack.c.l.b16 %v48
    %v64 = vunpack.c.l.b16 %v49
    %v65 = vunpack.c.l.b16 %v50
    %v66 = vpack.c.b16 %v63, %v62
    %v67 = vpack.c.b16 %v65, %v64
    %vm70 = vcmask 261120
    %v72 = vsel %vm70, %v46, 0
    %74 = vmatprep.subr.bf16.mxu0 0
    %75 = vmatpush1.bf16.msra.mxu0 %v66
    %76 = vmatprep.subr.bf16.mxu0 0
    %77 = vmatpush1.bf16.msra.mxu0 %v67
    %78 = vmatprep.subr.bf16.mxu0 0
    %79 = vmatpush1.bf16.msra.mxu0 0
    %80 = vmatprep.subr.bf16.mxu0 0
    %81 = vmatpush1.bf16.msra.mxu0 0
    %82 = vmatprep.subr.bf16.mxu0 0
    %83 = vmatpush1.bf16.msra.mxu0 0
    %84 = vmatprep.subr.bf16.mxu0 0
    %85 = vmatpush1.bf16.msra.mxu0 0
    %86 = vmatprep.subr.bf16.mxu0 0
    %87 = vmatpush1.bf16.msra.mxu0 0
    %88 = vmatprep.subr.bf16.mxu0 0
    %89 = vmatpush1.bf16.msra.mxu0 0
    %90 = vmatprep.subr.bf16.mxu0 0
    %91 = vmatpush1.bf16.msra.mxu0 0
    %92 = vmatprep.subr.bf16.mxu0 0
    %93 = vmatpush1.bf16.msra.mxu0 0
    %94 = vmatprep.subr.bf16.mxu0 0
    %95 = vmatpush1.bf16.msra.mxu0 0
    %96 = vmatprep.subr.bf16.mxu0 0
    %97 = vmatpush1.bf16.msra.mxu0 0
    %98 = vmatprep.subr.bf16.mxu0 0
    %99 = vmatpush1.bf16.msra.mxu0 0
    %100 = vmatprep.subr.bf16.mxu0 0
    %101 = vmatpush1.bf16.msra.mxu0 0
    %102 = vmatprep.subr.bf16.mxu0 0
    %103 = vmatpush1.bf16.msra.mxu0 0
    %104 = vmatprep.subr.bf16.mxu0 0
    %105 = vmatpush1.bf16.msra.mxu0 0
    %106 = vmatprep.mubr.bf16.mxu0 0
    %107 = vmatmul.mubr.bf16.gmra.mrb[0].mxu0 %v72
    %v108 = vpop.f32.mrb[0].mxu0
    %v109 = vadd.f32 %v56, %v108
    %v110 = vpop.f32.mrb[0].mxu0
    %v111 = vpop.f32.mrb[0].mxu0
    %v112 = vadd.f32 %v56, %v111
    %v113 = vpop.f32.mrb[0].mxu0
    %114 = vdwg.mxu0
    %v115 = vpack.c.bf16 %v112, %v109
    %v117 = vunpack.c.l.b16 %v115
    %v118 = vunpack.c.h.b16 %v115
    %v119 = vpack.c.b16 %v117, %v117
    %v120 = vpack.c.b16 %v118, %v118
    %vm123 = vcmask 781312
    %124 = vst.msk [vmem:[#allocation7] sm:$0xf] %vm123, %v119
    %125 = vst.msk [vmem:[#allocation7 + $0x4] sm:$0xf] %vm123, %v120
    // Predicated region
    $region22: #{tpu_custom_call.1} parent=1 // pred_check
      _
    $region23: #{tpu_custom_call.1} parent=1 // pred_check_branch
      %127 = sbr.rel (0) target = $region25
    $region24: #{tpu_custom_call.1} parent=1 // pred_region
      %s129 = ssub.s32 128, 128
      %130 = vsyncadd [#allocation4], %s129
      %s131 = sshll.u32 [#allocation7], 4
      %s132 = int_to_ptr.vmem [resolvable:$true] %s131
      %137 = dma.vmem_to_hbm [thread:$0]  %s132, 128, %s3, [#allocation4], 64, 64, 4
    $region25: #{tpu_custom_call.1} parent=1 // pred_fallthru
      _
    // Predicated region
    $region26: #{tpu_custom_call.1} parent=1 // pred_check
      _
    $region27: #{tpu_custom_call.1} parent=1 // pred_check_branch
      %139 = sbr.rel (0) target = $region29
    $region28: #{tpu_custom_call.1} parent=1 // pred_region
      %140 = dma.done [#allocation4], 128
    $region29: #{tpu_custom_call.1} parent=1 // pred_fallthru
      _
    %141 = vsyncpa [#allocation3], 1
    %142 = vsyncpa [#allocation6], 1
    %143 = vsyncpa [#allocation4], 1

</llo_original>
